<compile_context>
chip_gen: v6e
topology: v6e:2x2x1
jax: 0.10.0
libtpu: 0.0.40
codegen_flags: <defaults>
</compile_context>

<pallas_src>
import functools
import math

import jax
import jax.numpy as jnp
from jax import lax
from jax.experimental import pallas as pl
from jax.experimental.pallas import tpu as pltpu


def _proj_kernel(x_ref, wq_ref, wkv_ref, bq_ref, bkv_ref,
                 q_ref, k_ref, v_ref, *, hd):
    """One row-tile: q = x@Wq + bq (scale folded), [k|v] = x@Wkv + bkv."""
    x = x_ref[...]
    q = jnp.dot(x, wq_ref[...], preferred_element_type=jnp.float32) + bq_ref[...]
    kv = jnp.dot(x, wkv_ref[...], preferred_element_type=jnp.float32) + bkv_ref[...]
    q_ref[...] = q.astype(q_ref.dtype)
    k_ref[...] = kv[:, :hd].astype(k_ref.dtype)
    v_ref[...] = kv[:, hd:].astype(v_ref.dtype)


def _flash_kernel(qi_tbl, ki_tbl, q_ref, k_ref, v_ref, o_ref,
                  m_ref, l_ref, acc_ref,
                  *, num_heads, d_out, block_q, block_kv):
    """Grid point (b, step): one causally-live (q-tile, kv-tile) pair.

    Ref shapes (batch dim squeezed by BlockSpec):
      qi_tbl/ki_tbl : (n_steps,) int32 SMEM   q-/kv-tile index for this step
      q_ref         : (block_q,  H*D_out)     pre-projected, pre-scaled Q
      k_ref, v_ref  : (block_kv, H*D_out)     pre-projected K / V
      o_ref         : (block_q,  H*D_out)     concat-over-heads output
      m_ref, l_ref  : (H, block_q, 1)         running max / denom (VMEM scratch)
      acc_ref       : (block_q,  H*D_out)     running numerator   (VMEM scratch)
    """
    step = pl.program_id(1)
    qi = qi_tbl[step]
    ki = ki_tbl[step]

    @pl.when(ki == 0)
    def _init():
        m_ref[...] = jnp.full(m_ref.shape, -jnp.inf, dtype=m_ref.dtype)
        l_ref[...] = jnp.zeros(l_ref.shape, dtype=l_ref.dtype)
        acc_ref[...] = jnp.zeros(acc_ref.shape, dtype=acc_ref.dtype)

    q = q_ref[...]
    k = k_ref[...]
    v = v_ref[...]

    row = qi * block_q + lax.broadcasted_iota(jnp.int32, (block_q, block_kv), 0)
    col = ki * block_kv + lax.broadcasted_iota(jnp.int32, (block_q, block_kv), 1)
    causal_mask = col > row  # True -> masked.  Safe with -inf because the first
                             # visited kv tile (ki == 0) is never fully masked.

    for h in range(num_heads):               # small static head loop (H ~ 4..16)
        lo, hi = h * d_out, (h + 1) * d_out
        # QK^T without materializing a transpose: contract the last dims.
        s = lax.dot_general(q[:, lo:hi], k[:, lo:hi],
                            (((1,), (1,)), ((), ())),
                            preferred_element_type=jnp.float32)
        s = jnp.where(causal_mask, -jnp.inf, s)

        m_prev = m_ref[h]                                     # (block_q, 1)
        m_new = jnp.maximum(m_prev, jnp.max(s, axis=-1, keepdims=True))
        alpha = jnp.exp(m_prev - m_new)
        p = jnp.exp(s - m_new)
        l_ref[h] = alpha * l_ref[h] + jnp.sum(p, axis=-1, keepdims=True)
        m_ref[h] = m_new
        # dropout(p=0.0) on attention weights == identity (eval semantics)
        ctx = jnp.dot(p.astype(v.dtype), v[:, lo:hi],
                      preferred_element_type=jnp.float32)
        # In-place per-head slice update (no per-step concatenate).
        acc_ref[:, lo:hi] = alpha * acc_ref[:, lo:hi] + ctx

    # Last live kv tile for this q tile -> normalize and emit.
    @pl.when((ki + 1) * block_kv >= (qi + 1) * block_q)
    def _finalize():
        for h in range(num_heads):
            lo, hi = h * d_out, (h + 1) * d_out
            # approx=True would use the free EUP slot but perturbs numerics;
            # keep exact divide to match the PyTorch module.
            inv = pl.reciprocal(l_ref[h], approx=False)
            o_ref[:, lo:hi] = (acc_ref[:, lo:hi] * inv).astype(o_ref.dtype)


def _pick_tile(total, pref, mult=8):
    """Largest multiple-of-`mult` tile <= pref that divides total (else total)."""
    pref = max(mult, (pref // mult) * mult)
    if total <= pref:
        return total
    for cand in range(pref, mult - 1, -mult):
        if total % cand == 0:
            return cand
    # Fallback: single un-tiled block.  Legal but a VMEM hazard for large,
    # non-divisible T; proper handling would pad T in the wrapper.
    return total


def multi_head_stacked(x, wq, wk, wv, bq, bk, bv, *,
                       block_q=128, block_kv=256, block_rows=256,
                       mxu_dtype=None):
    """x: (B, T, D_in); wq/wk/wv: (H, D_in, D_out); bq/bk/bv: (H, 1, D_out).

    Returns (B, T, H*D_out), matching torch.concat of per-head outputs on dim=-1.
    """
    B, T, D_in = x.shape
    H, _, D_out = wq.shape
    HD = H * D_out
    scale = 1.0 / math.sqrt(D_out)
    out_dtype = x.dtype
    proj_dtype = jnp.float32 if mxu_dtype is None else mxu_dtype
    mult = 16 if proj_dtype == jnp.bfloat16 else 8

    # Pack heads lane-dense: (H, D_in, D_out) -> (D_in, H*D_out); fold the softmax
    # scale into Wq/bq so the (T, T) scores never need rescaling.
    wq_f = jnp.transpose(wq, (1, 0, 2)).reshape(D_in, HD) * scale
    wk_f = jnp.transpose(wk, (1, 0, 2)).reshape(D_in, HD)
    wv_f = jnp.transpose(wv, (1, 0, 2)).reshape(D_in, HD)
    wkv_f = jnp.concatenate([wk_f, wv_f], axis=1)                 # (D_in, 2*HD)
    bq_f = bq.reshape(1, HD) * scale
    bkv_f = jnp.concatenate([bk.reshape(1, HD), bv.reshape(1, HD)], axis=1)

    if mxu_dtype is not None:   # narrow MXU feed; biases + accumulation stay f32
        x = x.astype(mxu_dtype)
        wq_f = wq_f.astype(mxu_dtype)
        wkv_f = wkv_f.astype(mxu_dtype)

    # ---------------- Pass 1: project Q/K/V once per token ----------------
    rows = B * T
    tr = _pick_tile(rows, block_rows, mult)
    x2 = x.reshape(rows, D_in)
    q_proj, k_proj, v_proj = pl.pallas_call(
        functools.partial(_proj_kernel, hd=HD),
        out_shape=(jax.ShapeDtypeStruct((rows, HD), proj_dtype),
                   jax.ShapeDtypeStruct((rows, HD), proj_dtype),
                   jax.ShapeDtypeStruct((rows, HD), proj_dtype)),
        grid_spec=pltpu.PrefetchScalarGridSpec(
            num_scalar_prefetch=0,
            grid=(rows // tr,),
            in_specs=[pl.BlockSpec((tr, D_in), lambda i: (i, 0)),
                      pl.BlockSpec((D_in, HD), lambda i: (0, 0)),
                      pl.BlockSpec((D_in, 2 * HD), lambda i: (0, 0)),
                      pl.BlockSpec((1, HD), lambda i: (0, 0)),
                      pl.BlockSpec((1, 2 * HD), lambda i: (0, 0))],
            out_specs=[pl.BlockSpec((tr, HD), lambda i: (i, 0)),
                       pl.BlockSpec((tr, HD), lambda i: (i, 0)),
                       pl.BlockSpec((tr, HD), lambda i: (i, 0))]),
        compiler_params=pltpu.CompilerParams(
            dimension_semantics=("parallel",),
            vmem_limit_bytes=32 * 1024 * 1024),
    )(x2, wq_f, wkv_f, bq_f, bkv_f)
    q_proj = q_proj.reshape(B, T, HD)
    k_proj = k_proj.reshape(B, T, HD)
    v_proj = v_proj.reshape(B, T, HD)

    # ---------------- Pass 2: flash attention over the causal triangle --------
    tq = _pick_tile(T, block_q, mult)
    tkv = _pick_tile(T, block_kv, mult)
    nq = T // tq

    # Enumerate only causally-live (qi, ki) tile pairs (skips dead tiles' DMA
    # and grid-step overhead entirely).
    qi_list, ki_list = [], []
    for qi in range(nq):
        live_kv = -(-((qi + 1) * tq) // tkv)          # cdiv((qi+1)*tq, tkv)
        for ki in range(live_kv):
            qi_list.append(qi)
            ki_list.append(ki)
    qi_tbl = jnp.asarray(qi_list, dtype=jnp.int32)
    ki_tbl = jnp.asarray(ki_list, dtype=jnp.int32)
    n_steps = len(qi_list)

    kernel = functools.partial(_flash_kernel, num_heads=H, d_out=D_out,
                               block_q=tq, block_kv=tkv)

    q_spec = pl.BlockSpec((None, tq, HD), lambda b, s, qt, kt: (b, qt[s], 0))
    k_spec = pl.BlockSpec((None, tkv, HD), lambda b, s, qt, kt: (b, kt[s], 0))
    v_spec = pl.BlockSpec((None, tkv, HD), lambda b, s, qt, kt: (b, kt[s], 0))
    o_spec = pl.BlockSpec((None, tq, HD), lambda b, s, qt, kt: (b, qt[s], 0))

    return pl.pallas_call(
        kernel,
        out_shape=jax.ShapeDtypeStruct((B, T, HD), out_dtype),
        grid_spec=pltpu.PrefetchScalarGridSpec(
            num_scalar_prefetch=2,
            grid=(B, n_steps),
            in_specs=[q_spec, k_spec, v_spec],
            out_specs=o_spec,
            scratch_shapes=[
                pltpu.VMEM((H, tq, 1), jnp.float32),   # m (running max)
                pltpu.VMEM((H, tq, 1), jnp.float32),   # l (running denom)
                pltpu.VMEM((tq, HD), jnp.float32),     # acc (running numerator)
            ]),
        compiler_params=pltpu.CompilerParams(
            # B shards across TensorCores (v7x megacore); the flattened causal
            # step axis carries the accumulators -> 'arbitrary'.
            dimension_semantics=("parallel", "arbitrary"),
            vmem_limit_bytes=32 * 1024 * 1024),
    )(qi_tbl, ki_tbl, q_proj, k_proj, v_proj)


def _reference(x, wq, wk, wv, bq, bk, bv):
    """Pure-JAX reference mirroring the PyTorch forward (eval mode)."""
    H, _, D_out = wq.shape
    T = x.shape[1]
    outs = []
    for h in range(H):
        q = x @ wq[h] + bq[h]
        k = x @ wk[h] + bk[h]
        v = x @ wv[h] + bv[h]
        s = jnp.einsum("btd,bsd->bts", q, k)
        mask = jnp.triu(jnp.ones((T, T), dtype=bool), k=1)
        s = jnp.where(mask[None], -jnp.inf, s)
        a = jax.nn.softmax(s / jnp.sqrt(jnp.float32(D_out)), axis=-1)
        outs.append(jnp.einsum("bts,bsd->btd", a, v))
    return jnp.concatenate(outs, axis=-1)


if __name__ == "__main__":
    # Module hyperparams (small, consistent with the forward):
    head_num, in_dim, out_dim = 4, 32, 16
    batch, seq = 2, 8            # seq <= context_vec_size
    qkv_bias = True              # bias=True; dropout=0.0 (eval semantics)

    key = jax.random.PRNGKey(0)
    kx, kq, kk, kv, kbq, kbk, kbv, kx2 = jax.random.split(key, 8)

    x = jax.random.normal(kx, (batch, seq, in_dim), dtype=jnp.float32)

    # Deterministic init, roughly matching nn.Linear's U(-1/sqrt(in), 1/sqrt(in)).
    lim = 1.0 / math.sqrt(in_dim)
    shp_w = (head_num, in_dim, out_dim)
    shp_b = (head_num, 1, out_dim)
    wq = jax.random.uniform(kq, shp_w, jnp.float32, -lim, lim)
    wk = jax.random.uniform(kk, shp_w, jnp.float32, -lim, lim)
    wv = jax.random.uniform(kv, shp_w, jnp.float32, -lim, lim)
    bq = jax.random.uniform(kbq, shp_b, jnp.float32, -lim, lim) if qkv_bias else jnp.zeros(shp_b)
    bk = jax.random.uniform(kbk, shp_b, jnp.float32, -lim, lim) if qkv_bias else jnp.zeros(shp_b)
    bv = jax.random.uniform(kbv, shp_b, jnp.float32, -lim, lim) if qkv_bias else jnp.zeros(shp_b)

    # Primary check at the module's toy shapes (single q/kv tile).
    out = jax.block_until_ready(multi_head_stacked(x, wq, wk, wv, bq, bk, bv))
    ref = _reference(x, wq, wk, wv, bq, bk, bv)
    assert out.shape == (batch, seq, head_num * out_dim), out.shape
    assert jnp.allclose(out, ref, atol=1e-4, rtol=1e-4), float(jnp.max(jnp.abs(out - ref)))

    # Secondary check exercising the triangular flash path (multiple q- and
    # kv-tiles, online softmax, dead-tile skipping via the step tables).
    seq2 = 256
    x2 = jax.random.normal(kx2, (batch, seq2, in_dim), dtype=jnp.float32)
    out2 = jax.block_until_ready(
        multi_head_stacked(x2, wq, wk, wv, bq, bk, bv, block_q=64, block_kv=128))
    ref2 = _reference(x2, wq, wk, wv, bq, bk, bv)
    assert out2.shape == (batch, seq2, head_num * out_dim), out2.shape
    assert jnp.allclose(out2, ref2, atol=1e-4, rtol=1e-4), float(jnp.max(jnp.abs(out2 - ref2)))

    print("KERNEL_OK")
</pallas_src>

<mosaic_0001>
module attributes {stable_mosaic.version = 11 : i64} {
  func.func @_proj_kernel(%arg0: i32, %arg1: memref<16x32xf32, #tpu.memory_space<vmem>>, %arg2: memref<32x64xf32, #tpu.memory_space<vmem>>, %arg3: memref<32x128xf32, #tpu.memory_space<vmem>>, %arg4: memref<1x64xf32, #tpu.memory_space<vmem>>, %arg5: memref<1x128xf32, #tpu.memory_space<vmem>>, %arg6: memref<16x64xf32, #tpu.memory_space<vmem>>, %arg7: memref<16x64xf32, #tpu.memory_space<vmem>>, %arg8: memref<16x64xf32, #tpu.memory_space<vmem>>) attributes {dimension_semantics = [#tpu.dimension_semantics<parallel>], iteration_bounds = array<i64: 1>, scalar_prefetch = 0 : i64, scratch_operands = 0 : i64, tpu.core_type = #tpu.core_type<tc>, window_params = [{transform_indices = @transform_0, window_bounds = array<i64: 16, 32>}, {pipeline_mode = #tpu.pipeline_mode<synchronous>, transform_indices = @transform_1, window_bounds = array<i64: 32, 64>}, {pipeline_mode = #tpu.pipeline_mode<synchronous>, transform_indices = @transform_2, window_bounds = array<i64: 32, 128>}, {pipeline_mode = #tpu.pipeline_mode<synchronous>, transform_indices = @transform_3, window_bounds = array<i64: 1, 64>}, {pipeline_mode = #tpu.pipeline_mode<synchronous>, transform_indices = @transform_4, window_bounds = array<i64: 1, 128>}, {transform_indices = @transform_5, window_bounds = array<i64: 16, 64>}, {transform_indices = @transform_6, window_bounds = array<i64: 16, 64>}, {transform_indices = @transform_7, window_bounds = array<i64: 16, 64>}]} {
    %c0 = arith.constant 0 : index
    %c0_0 = arith.constant 0 : index
    %0 = vector.load %arg1[%c0, %c0_0] : memref<16x32xf32, #tpu.memory_space<vmem>>, vector<16x32xf32>
    %c0_1 = arith.constant 0 : index
    %c0_2 = arith.constant 0 : index
    %1 = vector.load %arg2[%c0_1, %c0_2] : memref<32x64xf32, #tpu.memory_space<vmem>>, vector<32x64xf32>
    %cst = arith.constant dense<0.000000e+00> : vector<16x64xf32>
    %2 = tpu.matmul %0, %1, %cst {dimension_numbers = #tpu.dot_dimension_numbers<[1], [0], [0], [1], [0, 0, 1, 1], [], []>} : vector<16x32xf32>, vector<32x64xf32>, vector<16x64xf32> -> vector<16x64xf32>
    %c0_3 = arith.constant 0 : index
    %c0_4 = arith.constant 0 : index
    %3 = vector.load %arg4[%c0_3, %c0_4] : memref<1x64xf32, #tpu.memory_space<vmem>>, vector<1x64xf32>
    %4 = vector.broadcast %3 : vector<1x64xf32> to vector<16x64xf32>
    %5 = arith.addf %2, %4 : vector<16x64xf32>
    %c0_5 = arith.constant 0 : index
    %c0_6 = arith.constant 0 : index
    %6 = vector.load %arg3[%c0_5, %c0_6] : memref<32x128xf32, #tpu.memory_space<vmem>>, vector<32x128xf32>
    %cst_7 = arith.constant dense<0.000000e+00> : vector<16x128xf32>
    %7 = tpu.matmul %0, %6, %cst_7 {dimension_numbers = #tpu.dot_dimension_numbers<[1], [0], [0], [1], [0, 0, 1, 1], [], []>} : vector<16x32xf32>, vector<32x128xf32>, vector<16x128xf32> -> vector<16x128xf32>
    %c0_8 = arith.constant 0 : index
    %c0_9 = arith.constant 0 : index
    %8 = vector.load %arg5[%c0_8, %c0_9] : memref<1x128xf32, #tpu.memory_space<vmem>>, vector<1x128xf32>
    %9 = vector.broadcast %8 : vector<1x128xf32> to vector<16x128xf32>
    %10 = arith.addf %7, %9 : vector<16x128xf32>
    %c0_10 = arith.constant 0 : index
    %c0_11 = arith.constant 0 : index
    %11 = vector.load %arg6[%c0_10, %c0_11] : memref<16x64xf32, #tpu.memory_space<vmem>>, vector<16x64xf32>
    tpu.vector_store %arg6[%c0_10, %c0_11], %5 {strides = array<i32>} : memref<16x64xf32, #tpu.memory_space<vmem>>, vector<16x64xf32>,
    %12 = vector.extract_strided_slice %10 {offsets = [0, 0], sizes = [16, 64], strides = [1, 1]} : vector<16x128xf32> to vector<16x64xf32>
    %c0_12 = arith.constant 0 : index
    %c0_13 = arith.constant 0 : index
    %13 = vector.load %arg7[%c0_12, %c0_13] : memref<16x64xf32, #tpu.memory_space<vmem>>, vector<16x64xf32>
    tpu.vector_store %arg7[%c0_12, %c0_13], %12 {strides = array<i32>} : memref<16x64xf32, #tpu.memory_space<vmem>>, vector<16x64xf32>,
    %14 = vector.extract_strided_slice %10 {offsets = [0, 64], sizes = [16, 64], strides = [1, 1]} : vector<16x128xf32> to vector<16x64xf32>
    %c0_14 = arith.constant 0 : index
    %c0_15 = arith.constant 0 : index
    %15 = vector.load %arg8[%c0_14, %c0_15] : memref<16x64xf32, #tpu.memory_space<vmem>>, vector<16x64xf32>
    tpu.vector_store %arg8[%c0_14, %c0_15], %14 {strides = array<i32>} : memref<16x64xf32, #tpu.memory_space<vmem>>, vector<16x64xf32>,
    return
  }
  func.func @transform_0(%arg0: i32) -> (i32, i32) {
    %c0_i32 = arith.constant 0 : i32
    %c0_i32_0 = arith.constant 0 : i32
    return %arg0, %c0_i32 : i32, i32
  }
  func.func @transform_1(%arg0: i32) -> (i32, i32) {
    %c0_i32 = arith.constant 0 : i32
    %c0_i32_0 = arith.constant 0 : i32
    %c0_i32_1 = arith.constant 0 : i32
    return %c0_i32, %c0_i32_0 : i32, i32
  }
  func.func @transform_2(%arg0: i32) -> (i32, i32) {
    %c0_i32 = arith.constant 0 : i32
    %c0_i32_0 = arith.constant 0 : i32
    %c0_i32_1 = arith.constant 0 : i32
    return %c0_i32, %c0_i32_0 : i32, i32
  }
  func.func @transform_3(%arg0: i32) -> (i32, i32) {
    %c0_i32 = arith.constant 0 : i32
    %c0_i32_0 = arith.constant 0 : i32
    %c0_i32_1 = arith.constant 0 : i32
    return %c0_i32, %c0_i32_0 : i32, i32
  }
  func.func @transform_4(%arg0: i32) -> (i32, i32) {
    %c0_i32 = arith.constant 0 : i32
    %c0_i32_0 = arith.constant 0 : i32
    %c0_i32_1 = arith.constant 0 : i32
    return %c0_i32, %c0_i32_0 : i32, i32
  }
  func.func @transform_5(%arg0: i32) -> (i32, i32) {
    %c0_i32 = arith.constant 0 : i32
    %c0_i32_0 = arith.constant 0 : i32
    return %arg0, %c0_i32 : i32, i32
  }
  func.func @transform_6(%arg0: i32) -> (i32, i32) {
    %c0_i32 = arith.constant 0 : i32
    %c0_i32_0 = arith.constant 0 : i32
    return %arg0, %c0_i32 : i32, i32
  }
  func.func @transform_7(%arg0: i32) -> (i32, i32) {
    %c0_i32 = arith.constant 0 : i32
    %c0_i32_0 = arith.constant 0 : i32
    return %arg0, %c0_i32 : i32, i32
  }
}

</mosaic_0001>

<llo_original>
// kernel: tpu_custom_call.1
$region0: #{tpu_custom_call.1}
  #allocation0 [shape = 'u32[]', space=smem, size = 0x4, offset = 0x4, fixed_abs, tag = 'smem constant byte address 0x4 - core index']
  #allocation1 [shape = 'u32[144,128]{1,0:T(1,128)}', space=vmem, size = 0x12000, scoped, tag = 'internal scratch']
  %s0 = inlined_call_operand.hbm [shape: f32[16,32], index: 0, kind: input, shape index: {}]
  %s1 = inlined_call_operand.hbm [shape: f32[32,64], index: 1, kind: input, shape index: {}]
  %s2 = inlined_call_operand.hbm [shape: f32[32,128], index: 2, kind: input, shape index: {}]
  %s3 = inlined_call_operand.vmem [shape: f32[1,64], index: 3, kind: input, shape index: {}]
  %s4 = inlined_call_operand.vmem [shape: f32[1,128], index: 4, kind: input, shape index: {}]
  %s5 = inlined_call_operand.hbm [shape: f32[16,64], index: 5, kind: output, shape index: {0}]
  %s6 = inlined_call_operand.hbm [shape: f32[16,64], index: 6, kind: output, shape index: {1}]
  %s7 = inlined_call_operand.hbm [shape: f32[16,64], index: 7, kind: output, shape index: {2}]
  %8 = xla_tuple %s5, %s6, %s7
  %s9 = sld [smem:[#allocation0]]
  $region58: #{tpu_custom_call.1} parent=0
    _
  %s11 = ssub.s32 1, %s9
  %s12 = scalar_select 0, %s11, %s9
  $region1: #{tpu_custom_call.1} parent=0
    #allocation2 [shape = 'u8[8192]{0}', space=vmem, size = 0x2000, scoped, tag = 'input window, operand 0, single buffered']
    #allocation3 [shape = 's32[1]{0}', space=sflag, size = 0x4, scoped, tag = 'scoped memory for tpu_custom_call.1']
    #allocation4 [shape = 's32[1]{0}', space=sflag, size = 0x4, scoped, tag = 'scoped memory for tpu_custom_call.1']
    #allocation5 [shape = 'u8[16384]{0}', space=vmem, size = 0x4000, scoped, tag = 'input window, operand 1, single buffered']
    #allocation6 [shape = 's32[1]{0}', space=sflag, size = 0x4, scoped, tag = 'scoped memory for tpu_custom_call.1']
    #allocation7 [shape = 'u8[16384]{0}', space=vmem, size = 0x4000, scoped, tag = 'input window, operand 2, single buffered']
    #allocation8 [shape = 'u8[8192]{0}', space=vmem, size = 0x2000, scoped, tag = 'output window, operand 0, single buffered']
    #allocation9 [shape = 'u8[8192]{0}', space=vmem, size = 0x2000, scoped, tag = 'output window, operand 1, single buffered']
    #allocation10 [shape = 's32[1]{0}', space=sflag, size = 0x4, scoped, tag = 'scoped memory for tpu_custom_call.1']
    #allocation11 [shape = 'u8[8192]{0}', space=vmem, size = 0x2000, scoped, tag = 'output window, operand 2, single buffered']
    %13 = vsyncpa [#allocation3], 0
    %14 = vsyncpa [#allocation6], 0
    %15 = vsyncpa [#allocation4], 0
    %16 = vsyncpa [#allocation10], 0
    // Predicated region
    $region2: #{tpu_custom_call.1} parent=1 // pred_check
      _
    $region3: #{tpu_custom_call.1} parent=1 // pred_check_branch
      %18 = sbr.rel (0) target = $region5
    $region4: #{tpu_custom_call.1} parent=1 // pred_region
      %s20 = ssub.s32 256, 256
      %21 = vsyncadd [#allocation3], %s20
      %s22 = sshll.u32 [#allocation2], 4
      %s23 = int_to_ptr.vmem [resolvable:$true] %s22
      %28 = dma.hbm_to_vmem [thread:$0]  %s0, 256, %s23, [#allocation3], 128, 128, 8
    $region5: #{tpu_custom_call.1} parent=1 // pred_fallthru
      _
    // Predicated region
    $region6: #{tpu_custom_call.1} parent=1 // pred_check
      _
    $region7: #{tpu_custom_call.1} parent=1 // pred_check_branch
      %30 = sbr.rel (0) target = $region9
    $region8: #{tpu_custom_call.1} parent=1 // pred_region
      %s32 = ssub.s32 512, 512
      %33 = vsyncadd [#allocation6], %s32
      %s34 = sshll.u32 [#allocation5], 4
      %s35 = int_to_ptr.vmem [resolvable:$true] %s34
      %40 = dma.hbm_to_vmem [thread:$0]  %s1, 512, %s35, [#allocation6], 128, 128, 8
    $region9: #{tpu_custom_call.1} parent=1 // pred_fallthru
      _
    // Predicated region
    $region10: #{tpu_custom_call.1} parent=1 // pred_check
      _
    $region11: #{tpu_custom_call.1} parent=1 // pred_check_branch
      %42 = sbr.rel (0) target = $region13
    $region12: #{tpu_custom_call.1} parent=1 // pred_region
      %s44 = ssub.s32 512, 512
      %45 = vsyncadd [#allocation6], %s44
      %s46 = sshll.u32 [#allocation7], 4
      %s47 = int_to_ptr.vmem [resolvable:$true] %s46
      %52 = dma.hbm_to_vmem [thread:$0]  %s2, 512, %s47, [#allocation6], 128, 128, 8
    $region13: #{tpu_custom_call.1} parent=1 // pred_fallthru
      _
    // Predicated region
    $region14: #{tpu_custom_call.1} parent=1 // pred_check
      _
    $region15: #{tpu_custom_call.1} parent=1 // pred_check_branch
      %54 = sbr.rel (0) target = $region17
    $region16: #{tpu_custom_call.1} parent=1 // pred_region
      _
    $region17: #{tpu_custom_call.1} parent=1 // pred_fallthru
      _
    // Predicated region
    $region18: #{tpu_custom_call.1} parent=1 // pred_check
      _
    $region19: #{tpu_custom_call.1} parent=1 // pred_check_branch
      %56 = sbr.rel (0) target = $region21
    $region20: #{tpu_custom_call.1} parent=1 // pred_region
      _
    $region21: #{tpu_custom_call.1} parent=1 // pred_fallthru
      _
    // Predicated region
    $region22: #{tpu_custom_call.1} parent=1 // pred_check
      _
    $region23: #{tpu_custom_call.1} parent=1 // pred_check_branch
      %58 = sbr.rel (0) target = $region25
    $region24: #{tpu_custom_call.1} parent=1 // pred_region
      %59 = dma.done [#allocation3], 256
    $region25: #{tpu_custom_call.1} parent=1 // pred_fallthru
      _
    // Predicated region
    $region26: #{tpu_custom_call.1} parent=1 // pred_check
      _
    $region27: #{tpu_custom_call.1} parent=1 // pred_check_branch
      %61 = sbr.rel (0) target = $region29
    $region28: #{tpu_custom_call.1} parent=1 // pred_region
      %62 = dma.done [#allocation6], 512
    $region29: #{tpu_custom_call.1} parent=1 // pred_fallthru
      _
    // Predicated region
    $region30: #{tpu_custom_call.1} parent=1 // pred_check
      _
    $region31: #{tpu_custom_call.1} parent=1 // pred_check_branch
      %64 = sbr.rel (0) target = $region33
    $region32: #{tpu_custom_call.1} parent=1 // pred_region
      %65 = dma.done [#allocation6], 512
    $region33: #{tpu_custom_call.1} parent=1 // pred_fallthru
      _
    %v66 = vld [vmem:[#allocation2] sm:$0xff]
    %v67 = vld [vmem:[#allocation2 + $0x8] sm:$0xff]
    %v68 = vld [vmem:[#allocation5] sm:$0xff]
    %v69 = vld [vmem:[#allocation5 + $0x8] sm:$0xff]
    %v70 = vld [vmem:[#allocation5 + $0x10] sm:$0xff]
    %v71 = vld [vmem:[#allocation5 + $0x18] sm:$0xff]
    %v72 = vld [vmem:[%s3] sm:$0x1]
    %v74 = vlaneseq
    %v75 = vshrl.u32 %v74, 7
    %v76 = vsub.s32 0, %v75
    %v77 = vrot.slane %v72, %v76
    %vm79 = vcmask 261120
    %v81 = vsel %vm79, %v66, 0
    %v84 = vsel %vm79, %v67, 0
    %86 = vmatprep.subr.mxu0 0.0
    %87 = vmatpush1.msra.mxu0 0.0
    %88 = vmatprep.subr.mxu0 0.0
    %89 = vmatpush1.msra.mxu0 0.0
    %90 = vmatprep.subr.mxu0 0.0
    %91 = vmatpush1.msra.mxu0 0.0
    %92 = vmatprep.subr.mxu0 0.0
    %93 = vmatpush1.msra.mxu0 0.0
    %94 = vmatprep.subr.mxu0 0.0
    %95 = vmatpush1.msra.mxu0 0.0
    %96 = vmatprep.subr.mxu0 0.0
    %97 = vmatpush1.msra.mxu0 0.0
    %98 = vmatprep.subr.mxu0 0.0
    %99 = vmatpush1.msra.mxu0 0.0
    %100 = vmatprep.subr.mxu0 0.0
    %101 = vmatpush1.msra.mxu0 0.0
    %102 = vmatprep.subr.mxu0 0.0
    %103 = vmatpush1.msra.mxu0 0.0
    %104 = vmatprep.subr.mxu0 0.0
    %105 = vmatpush1.msra.mxu0 0.0
    %106 = vmatprep.subr.mxu0 0.0
    %107 = vmatpush1.msra.mxu0 0.0
    %108 = vmatprep.subr.mxu0 0.0
    %109 = vmatpush1.msra.mxu0 0.0
    %110 = vmatprep.subr.mxu0 0.0
    %111 = vmatpush1.msra.mxu0 %v71
    %112 = vmatprep.subr.mxu0 0.0
    %113 = vmatpush1.msra.mxu0 %v70
    %114 = vmatprep.subr.mxu0 0.0
    %115 = vmatpush1.msra.mxu0 %v69
    %116 = vmatprep.subr.mxu0 0.0
    %117 = vmatpush1.msra.mxu0 %v68
    %118 = vmatprep.subr.mxu0 0.0
    %119 = vmatpush2.msra.mxu0 0.0
    %120 = vmatprep.subr.mxu0 0.0
    %121 = vmatpush2.msra.mxu0 0.0
    %122 = vmatprep.subr.mxu0 0.0
    %123 = vmatpush2.msra.mxu0 0.0
    %124 = vmatprep.subr.mxu0 0.0
    %125 = vmatpush2.msra.mxu0 0.0
    %126 = vmatprep.subr.mxu0 0.0
    %127 = vmatpush2.msra.mxu0 0.0
    %128 = vmatprep.subr.mxu0 0.0
    %129 = vmatpush2.msra.mxu0 0.0
    %130 = vmatprep.subr.mxu0 0.0
    %131 = vmatpush2.msra.mxu0 0.0
    %132 = vmatprep.subr.mxu0 0.0
    %133 = vmatpush2.msra.mxu0 0.0
    %134 = vmatprep.subr.mxu0 0.0
    %135 = vmatpush2.msra.mxu0 0.0
    %136 = vmatprep.subr.mxu0 0.0
    %137 = vmatpush2.msra.mxu0 0.0
    %138 = vmatprep.subr.mxu0 0.0
    %139 = vmatpush2.msra.mxu0 0.0
    %140 = vmatprep.subr.mxu0 0.0
    %141 = vmatpush2.msra.mxu0 0.0
    %142 = vmatprep.subr.mxu0 0.0
    %143 = vmatpush2.msra.mxu0 0.0
    %144 = vmatprep.subr.mxu0 0.0
    %145 = vmatpush2.msra.mxu0 0.0
    %146 = vmatprep.subr.mxu0 0.0
    %147 = vmatpush2.msra.mxu0 0.0
    %148 = vmatprep.subr.mxu0 0.0
    %149 = vmatpush2.msra.mxu0 0.0
    %150 = vmatprep.mubr.f32.mxu0 0.0
    %151 = vmatmul.mubr.f32.gmra.mxu0 %v81
    %v152 = vpop.f32.mrf.mxu0
    %v153 = vadd.f32 %v77, %v152
    %v154 = vpop.f32.mrf.mxu0
    %155 = vmatprep.mubr.f32.mxu0 0.0
    %156 = vmatmul.mubr.f32.gmra.mxu0 %v84
    %v157 = vpop.f32.mrf.mxu0
    %v158 = vadd.f32 %v77, %v157
    %v159 = vpop.f32.mrf.mxu0
    %160 = vdwg.mxu0
    %v161 = vld [vmem:[#allocation7] sm:$0xff]
    %v162 = vld [vmem:[#allocation7 + $0x8] sm:$0xff]
    %v163 = vld [vmem:[#allocation7 + $0x10] sm:$0xff]
    %v164 = vld [vmem:[#allocation7 + $0x18] sm:$0xff]
    %v165 = vld [vmem:[%s4] sm:$0x1]
    %v167 = vlaneseq
    %v168 = vshrl.u32 %v167, 7
    %v169 = vsub.s32 0, %v168
    %v170 = vrot.slane %v165, %v169
    %172 = vmatprep.subr.mxu0 0.0
    %173 = vmatpush1.msra.mxu0 0.0
    %174 = vmatprep.subr.mxu0 0.0
    %175 = vmatpush1.msra.mxu0 0.0
    %176 = vmatprep.subr.mxu0 0.0
    %177 = vmatpush1.msra.mxu0 0.0
    %178 = vmatprep.subr.mxu0 0.0
    %179 = vmatpush1.msra.mxu0 0.0
    %180 = vmatprep.subr.mxu0 0.0
    %181 = vmatpush1.msra.mxu0 0.0
    %182 = vmatprep.subr.mxu0 0.0
    %183 = vmatpush1.msra.mxu0 0.0
    %184 = vmatprep.subr.mxu0 0.0
    %185 = vmatpush1.msra.mxu0 0.0
    %186 = vmatprep.subr.mxu0 0.0
    %187 = vmatpush1.msra.mxu0 0.0
    %188 = vmatprep.subr.mxu0 0.0
    %189 = vmatpush1.msra.mxu0 0.0
    %190 = vmatprep.subr.mxu0 0.0
    %191 = vmatpush1.msra.mxu0 0.0
    %192 = vmatprep.subr.mxu0 0.0
    %193 = vmatpush1.msra.mxu0 0.0
    %194 = vmatprep.subr.mxu0 0.0
    %195 = vmatpush1.msra.mxu0 0.0
    %196 = vmatprep.subr.mxu0 0.0
    %197 = vmatpush1.msra.mxu0 %v164
    %198 = vmatprep.subr.mxu0 0.0
    %199 = vmatpush1.msra.mxu0 %v163
    %200 = vmatprep.subr.mxu0 0.0
    %201 = vmatpush1.msra.mxu0 %v162
    %202 = vmatprep.subr.mxu0 0.0
    %203 = vmatpush1.msra.mxu0 %v161
    %204 = vmatprep.subr.mxu0 0.0
    %205 = vmatpush2.msra.mxu0 0.0
    %206 = vmatprep.subr.mxu0 0.0
    %207 = vmatpush2.msra.mxu0 0.0
    %208 = vmatprep.subr.mxu0 0.0
    %209 = vmatpush2.msra.mxu0 0.0
    %210 = vmatprep.subr.mxu0 0.0
    %211 = vmatpush2.msra.mxu0 0.0
    %212 = vmatprep.subr.mxu0 0.0
    %213 = vmatpush2.msra.mxu0 0.0
    %214 = vmatprep.subr.mxu0 0.0
    %215 = vmatpush2.msra.mxu0 0.0
    %216 = vmatprep.subr.mxu0 0.0
    %217 = vmatpush2.msra.mxu0 0.0
    %218 = vmatprep.subr.mxu0 0.0
    %219 = vmatpush2.msra.mxu0 0.0
    %220 = vmatprep.subr.mxu0 0.0
    %221 = vmatpush2.msra.mxu0 0.0
    %222 = vmatprep.subr.mxu0 0.0
    %223 = vmatpush2.msra.mxu0 0.0
    %224 = vmatprep.subr.mxu0 0.0
    %225 = vmatpush2.msra.mxu0 0.0
    %226 = vmatprep.subr.mxu0 0.0
    %227 = vmatpush2.msra.mxu0 0.0
    %228 = vmatprep.subr.mxu0 0.0
    %229 = vmatpush2.msra.mxu0 0.0
    %230 = vmatprep.subr.mxu0 0.0
    %231 = vmatpush2.msra.mxu0 0.0
    %232 = vmatprep.subr.mxu0 0.0
    %233 = vmatpush2.msra.mxu0 0.0
    %234 = vmatprep.subr.mxu0 0.0
    %235 = vmatpush2.msra.mxu0 0.0
    %236 = vmatprep.mubr.f32.mxu0 0.0
    %237 = vmatmul.mubr.f32.gmra.mxu0 %v81
    %v238 = vpop.f32.mrf.mxu0
    %v239 = vadd.f32 %v170, %v238
    %v240 = vpop.f32.mrf.mxu0
    %241 = vmatprep.mubr.f32.mxu0 0.0
    %242 = vmatmul.mubr.f32.gmra.mxu0 %v84
    %v243 = vpop.f32.mrf.mxu0
    %v244 = vadd.f32 %v170, %v243
    %v245 = vpop.f32.mrf.mxu0
    %246 = vdwg.mxu0
    %vm247 = vcmask 523264
    %248 = vst.msk [vmem:[#allocation8] sm:$0xff] %vm247, %v153
    %249 = vst.msk [vmem:[#allocation8 + $0x8] sm:$0xff] %vm247, %v158
    %250 = vst.msk [vmem:[#allocation9] sm:$0xff] %vm247, %v239
    %251 = vst.msk [vmem:[#allocation9 + $0x8] sm:$0xff] %vm247, %v244
    %254 = vrot.lane.b32.xlu0 %v239, 64
    %v255 = vpop.permute.xlu0 %254
    %256 = vrot.lane.b32.xlu0 %v244, 64
    %v257 = vpop.permute.xlu0 %256
    %260 = vst.msk [vmem:[#allocation11] sm:$0xff] %vm247, %v255
    %261 = vst.msk [vmem:[#allocation11 + $0x8] sm:$0xff] %vm247, %v257
    // Predicated region
    $region34: #{tpu_custom_call.1} parent=1 // pred_check
      _
    $region35: #{tpu_custom_call.1} parent=1 // pred_check_branch
      %263 = sbr.rel (0) target = $region37
    $region36: #{tpu_custom_call.1} parent=1 // pred_region
      %s265 = ssub.s32 256, 256
      %266 = vsyncadd [#allocation4], %s265
      %s267 = sshll.u32 [#allocation8], 4
      %s268 = int_to_ptr.vmem [resolvable:$true] %s267
      %273 = dma.vmem_to_hbm [thread:$0]  %s268, 256, %s5, [#allocation4], 128, 128, 8
    $region37: #{tpu_custom_call.1} parent=1 // pred_fallthru
      _
    // Predicated region
    $region38: #{tpu_custom_call.1} parent=1 // pred_check
      _
    $region39: #{tpu_custom_call.1} parent=1 // pred_check_branch
      %275 = sbr.rel (0) target = $region41
    $region40: #{tpu_custom_call.1} parent=1 // pred_region
      %s277 = ssub.s32 256, 256
      %278 = vsyncadd [#allocation10], %s277
      %s279 = sshll.u32 [#allocation9], 4
      %s280 = int_to_ptr.vmem [resolvable:$true] %s279
      %285 = dma.vmem_to_hbm [thread:$0]  %s280, 256, %s6, [#allocation10], 128, 128, 8
    $region41: #{tpu_custom_call.1} parent=1 // pred_fallthru
      _
    // Predicated region
    $region42: #{tpu_custom_call.1} parent=1 // pred_check
      _
    $region43: #{tpu_custom_call.1} parent=1 // pred_check_branch
      %287 = sbr.rel (0) target = $region45
    $region44: #{tpu_custom_call.1} parent=1 // pred_region
      %s289 = ssub.s32 256, 256
      %290 = vsyncadd [#allocation10], %s289
      %s291 = sshll.u32 [#allocation11], 4
      %s292 = int_to_ptr.vmem [resolvable:$true] %s291
      %297 = dma.vmem_to_hbm [thread:$0]  %s292, 256, %s7, [#allocation10], 128, 128, 8
    $region45: #{tpu_custom_call.1} parent=1 // pred_fallthru
      _
    // Predicated region
    $region46: #{tpu_custom_call.1} parent=1 // pred_check
      _
    $region47: #{tpu_custom_call.1} parent=1 // pred_check_branch
      %299 = sbr.rel (0) target = $region49
    $region48: #{tpu_custom_call.1} parent=1 // pred_region
      %300 = dma.done [#allocation4], 256
    $region49: #{tpu_custom_call.1} parent=1 // pred_fallthru
      _
    // Predicated region
    $region50: #{tpu_custom_call.1} parent=1 // pred_check
      _
    $region51: #{tpu_custom_call.1} parent=1 // pred_check_branch
      %302 = sbr.rel (0) target = $region53
    $region52: #{tpu_custom_call.1} parent=1 // pred_region
      %303 = dma.done [#allocation10], 256
    $region53: #{tpu_custom_call.1} parent=1 // pred_fallthru
      _
    // Predicated region
    $region54: #{tpu_custom_call.1} parent=1 // pred_check
      _
    $region55: #{tpu_custom_call.1} parent=1 // pred_check_branch
      %305 = sbr.rel (0) target = $region57
    $region56: #{tpu_custom_call.1} parent=1 // pred_region
      %306 = dma.done [#allocation10], 256
    $region57: #{tpu_custom_call.1} parent=1 // pred_fallthru
      _
    %307 = vsyncpa [#allocation3], 1
    %308 = vsyncpa [#allocation6], 1
    %309 = vsyncpa [#allocation4], 1
    %310 = vsyncpa [#allocation10], 1

</llo_original>
